<compile_context>
chip_gen: v7x
topology: tpu7x:2x2x1
jax: 0.10.0
libtpu: 0.0.40
codegen_flags: <defaults>
</compile_context>

<pallas_src>
import functools

import jax
import jax.numpy as jnp
from jax.experimental import pallas as pl
from jax.experimental.pallas import tpu as pltpu

_LANES = 128
_SUBLANES = 8


def _make_kernel(valid_rows, block_m, blocks_per_core):
    fold = block_m // _SUBLANES

    def kernel(mu1_ref, lv1_ref, mu2_ref, lv2_ref, out_ref):
        c = pl.program_id(0)   # parallel (core) axis
        j = pl.program_id(1)   # arbitrary (reduction) axis

        @pl.when(j == 0)
        def _():
            out_ref[...] = jnp.zeros_like(out_ref)

        mu1 = mu1_ref[...].astype(jnp.float32)
        lv1 = lv1_ref[...].astype(jnp.float32)
        mu2 = mu2_ref[...].astype(jnp.float32)
        lv2 = lv2_ref[...].astype(jnp.float32)

        # 2*kld = (lv2 - lv1) + exp(lv1 - lv2) + (mu1 - mu2)^2 * exp(-lv2) - 1
        #  (log(sigma2/sigma1) == 0.5*(lv2-lv1);
        #   (exp(lv1)+diff^2)/(2*exp(lv2)) == 0.5*(exp(lv1-lv2) + diff^2*exp(-lv2)))
        diff = mu1 - mu2
        val = (lv2 - lv1) + jnp.exp(lv1 - lv2) + diff * diff * jnp.exp(-lv2) - 1.0

        # Mask rows past the logical end of the input: handles the partial tail block
        # and the phantom blocks of the parallel core split (jnp.where is a select,
        # so garbage/NaN in out-of-bounds rows never propagates).
        row_start = (c * blocks_per_core + j) * block_m
        row_ids = row_start + jax.lax.broadcasted_iota(jnp.int32, (block_m, 1), 0)
        val = jnp.where(row_ids < valid_rows, val, 0.0)

        # Sublane-fold to an (8, 128) running partial: pure VPU adds, tiny resident
        # accumulator (the output block is resident across the "arbitrary" axis).
        out_ref[...] += val.reshape(fold, _SUBLANES, _LANES).sum(axis=0)

    return kernel


def _round_up(x, m):
    return ((x + m - 1) // m) * m


@functools.partial(jax.jit, static_argnames=("block_rows", "num_cores"))
def kl_criterion(mu1, logvar1, mu2, logvar2, block_rows=2048, num_cores=2):
    """KL( N(mu1, exp(logvar1)) || N(mu2, exp(logvar2)) ), summed over all elements."""
    assert mu1.shape == logvar1.shape == mu2.shape == logvar2.shape

    n = 1
    for d in mu1.shape:
        n *= d
    rows = -(-n // _LANES)  # ceil(n / 128)

    # Block rows: multiple of 16 (covers f32 (8,128) and bf16 (16,128) tiling).
    block_m = max(16, min(_round_up(block_rows, 16), _round_up(rows, 16)))
    total_blocks = -(-rows // block_m)
    blocks_per_core = -(-total_blocks // num_cores)

    def prep(x):
        if x.dtype != jnp.float32 and x.dtype != jnp.bfloat16:
            x = x.astype(jnp.float32)
        flat = x.reshape(-1)
        if n % _LANES != 0:
            # Fallback copy only for ragged element counts; zero padding is exactly
            # KL-neutral for this formula.
            flat = jnp.pad(flat, (0, rows * _LANES - n))
        return flat.reshape(rows, _LANES)

    mu1p = prep(mu1)
    lv1p = prep(logvar1)
    mu2p = prep(mu2)
    lv2p = prep(logvar2)

    def in_map(c, j):
        # Clamp so phantom blocks (parallel-split / tail remainder) never index past
        # the last block; their contribution is zeroed by the in-kernel row mask.
        return (jnp.minimum(c * blocks_per_core + j, total_blocks - 1), 0)

    in_spec = pl.BlockSpec((block_m, _LANES), in_map)
    out_spec = pl.BlockSpec((None, _SUBLANES, _LANES), lambda c, j: (c, 0, 0))

    partials = pl.pallas_call(
        _make_kernel(rows, block_m, blocks_per_core),
        out_shape=jax.ShapeDtypeStruct((num_cores, _SUBLANES, _LANES), jnp.float32),
        grid_spec=pltpu.PrefetchScalarGridSpec(
            num_scalar_prefetch=0,
            grid=(num_cores, blocks_per_core),
            in_specs=[in_spec, in_spec, in_spec, in_spec],
            out_specs=out_spec,
        ),
        compiler_params=pltpu.CompilerParams(
            dimension_semantics=("parallel", "arbitrary"),
        ),
    )(mu1p, lv1p, mu2p, lv2p)

    # The per-element *0.5 is hoisted out of the hot loop and applied once here.
    return 0.5 * jnp.sum(partials)


def _kl_reference(mu1, logvar1, mu2, logvar2):
    sigma1 = jnp.exp(0.5 * logvar1)
    sigma2 = jnp.exp(0.5 * logvar2)
    kld = (
        jnp.log(sigma2 / sigma1)
        + (jnp.exp(logvar1) + (mu1 - mu2) ** 2) / (2.0 * jnp.exp(logvar2))
        - 0.5
    )
    return jnp.sum(kld)


if __name__ == "__main__":
    # Small deterministic example: batch=16, z_dim=32 (typical VAE latent shapes).
    key = jax.random.PRNGKey(0)
    k1, k2, k3, k4 = jax.random.split(key, 4)
    batch, zdim = 16, 32
    mu1 = jax.random.normal(k1, (batch, zdim), dtype=jnp.float32)
    logvar1 = 0.5 * jax.random.normal(k2, (batch, zdim), dtype=jnp.float32)
    mu2 = jax.random.normal(k3, (batch, zdim), dtype=jnp.float32)
    logvar2 = 0.5 * jax.random.normal(k4, (batch, zdim), dtype=jnp.float32)

    out = jax.block_until_ready(kl_criterion(mu1, logvar1, mu2, logvar2))
    ref = _kl_reference(mu1, logvar1, mu2, logvar2)
    assert jnp.allclose(out, ref, rtol=1e-5, atol=1e-4), (out, ref)

    # Non-128-divisible shape: exercises the pad fallback + in-kernel row masking.
    kb = jax.random.split(key, 4)
    mu1b = jax.random.normal(kb[0], (37, 100), dtype=jnp.float32)
    lv1b = 0.5 * jax.random.normal(kb[1], (37, 100), dtype=jnp.float32)
    mu2b = jax.random.normal(kb[2], (37, 100), dtype=jnp.float32)
    lv2b = 0.5 * jax.random.normal(kb[3], (37, 100), dtype=jnp.float32)
    out_b = jax.block_until_ready(kl_criterion(mu1b, lv1b, mu2b, lv2b))
    ref_b = _kl_reference(mu1b, lv1b, mu2b, lv2b)
    assert jnp.allclose(out_b, ref_b, rtol=1e-5, atol=1e-3), (out_b, ref_b)

    print("KERNEL_OK")
</pallas_src>

<mosaic_0001>
module attributes {stable_mosaic.version = 11 : i64} {
  func.func @kernel(%arg0: i32, %arg1: i32, %arg2: memref<16x128xf32, #tpu.memory_space<vmem>>, %arg3: memref<16x128xf32, #tpu.memory_space<vmem>>, %arg4: memref<16x128xf32, #tpu.memory_space<vmem>>, %arg5: memref<16x128xf32, #tpu.memory_space<vmem>>, %arg6: memref<1x8x128xf32, #tpu.memory_space<vmem>>) attributes {dimension_semantics = [#tpu.dimension_semantics<parallel>, #tpu.dimension_semantics<arbitrary>], iteration_bounds = array<i64: 2, 1>, scalar_prefetch = 0 : i64, scratch_operands = 0 : i64, tpu.core_type = #tpu.core_type<tc>, window_params = [{transform_indices = @transform_0, window_bounds = array<i64: 16, 128>}, {transform_indices = @transform_1, window_bounds = array<i64: 16, 128>}, {transform_indices = @transform_2, window_bounds = array<i64: 16, 128>}, {transform_indices = @transform_3, window_bounds = array<i64: 16, 128>}, {transform_indices = @transform_4, window_bounds = array<i64: 1, 8, 128>}]} {
    %c0_i32 = arith.constant 0 : i32
    %0 = arith.cmpi eq, %arg1, %c0_i32 : i32
    %1 = arith.extui %0 : i1 to i32
    %c0_i32_0 = arith.constant 0 : i32
    %2 = arith.cmpi ne, %1, %c0_i32_0 : i32
    scf.if %2 {
      %cst_17 = arith.constant 0.000000e+00 : f32
      %40 = vector.broadcast %cst_17 : f32 to vector<8x128xf32>
      %c0_18 = arith.constant 0 : index
      %c0_19 = arith.constant 0 : index
      %c0_20 = arith.constant 0 : index
      %41 = vector.load %arg6[%c0_18, %c0_19, %c0_20] : memref<1x8x128xf32, #tpu.memory_space<vmem>>, vector<1x8x128xf32>
      %42 = vector.shape_cast %41 : vector<1x8x128xf32> to vector<8x128xf32>
      %43 = vector.shape_cast %40 : vector<8x128xf32> to vector<1x8x128xf32>
      tpu.vector_store %arg6[%c0_18, %c0_19, %c0_20], %43 {strides = array<i32>} : memref<1x8x128xf32, #tpu.memory_space<vmem>>, vector<1x8x128xf32>,
    } else {
    }
    %c0 = arith.constant 0 : index
    %c0_1 = arith.constant 0 : index
    %3 = vector.load %arg2[%c0, %c0_1] : memref<16x128xf32, #tpu.memory_space<vmem>>, vector<16x128xf32>
    %c0_2 = arith.constant 0 : index
    %c0_3 = arith.constant 0 : index
    %4 = vector.load %arg3[%c0_2, %c0_3] : memref<16x128xf32, #tpu.memory_space<vmem>>, vector<16x128xf32>
    %c0_4 = arith.constant 0 : index
    %c0_5 = arith.constant 0 : index
    %5 = vector.load %arg4[%c0_4, %c0_5] : memref<16x128xf32, #tpu.memory_space<vmem>>, vector<16x128xf32>
    %c0_6 = arith.constant 0 : index
    %c0_7 = arith.constant 0 : index
    %6 = vector.load %arg5[%c0_6, %c0_7] : memref<16x128xf32, #tpu.memory_space<vmem>>, vector<16x128xf32>
    %7 = arith.subf %3, %5 : vector<16x128xf32>
    %8 = arith.subf %6, %4 : vector<16x128xf32>
    %9 = arith.subf %4, %6 : vector<16x128xf32>
    %10 = math.exp %9 : vector<16x128xf32>
    %11 = arith.addf %8, %10 : vector<16x128xf32>
    %12 = arith.mulf %7, %7 : vector<16x128xf32>
    %cst = arith.constant 0.000000e+00 : f32
    %13 = vector.broadcast %cst : f32 to vector<16x128xf32>
    %14 = arith.subf %13, %6 : vector<16x128xf32>
    %15 = math.exp %14 : vector<16x128xf32>
    %16 = arith.mulf %12, %15 : vector<16x128xf32>
    %17 = arith.addf %11, %16 : vector<16x128xf32>
    %cst_8 = arith.constant 1.000000e+00 : f32
    %18 = vector.broadcast %cst_8 : f32 to vector<16x128xf32>
    %19 = arith.subf %17, %18 : vector<16x128xf32>
    %c1_i32 = arith.constant 1 : i32
    %20 = arith.muli %arg0, %c1_i32 : i32
    %21 = arith.addi %20, %arg1 : i32
    %c16_i32 = arith.constant 16 : i32
    %22 = arith.muli %21, %c16_i32 : i32
    %23 = tpu.iota {dimensions = array<i32: 0>} : vector<16x1xi32>
    %24 = vector.broadcast %22 : i32 to vector<16x1xi32>
    %25 = arith.addi %24, %23 : vector<16x1xi32>
    %c4_i32 = arith.constant 4 : i32
    %26 = vector.broadcast %c4_i32 : i32 to vector<16x1xi32>
    %27 = arith.cmpi slt, %25, %26 : vector<16x1xi32>
    %cst_9 = arith.constant 0.000000e+00 : f32
    %28 = vector.shape_cast %27 : vector<16x1xi1> to vector<16x1xi1>
    %29 = vector.broadcast %28 : vector<16x1xi1> to vector<16x128xi1>
    %30 = vector.broadcast %cst_9 : f32 to vector<16x128xf32>
    %31 = arith.select %29, %19, %30 : vector<16x128xi1>, vector<16x128xf32>
    %c0_10 = arith.constant 0 : index
    %c0_11 = arith.constant 0 : index
    %c0_12 = arith.constant 0 : index
    %32 = vector.load %arg6[%c0_10, %c0_11, %c0_12] : memref<1x8x128xf32, #tpu.memory_space<vmem>>, vector<1x8x128xf32>
    %33 = vector.shape_cast %32 : vector<1x8x128xf32> to vector<8x128xf32>
    %34 = vector.shape_cast %31 : vector<16x128xf32> to vector<2x8x128xf32>
    %cst_13 = arith.constant dense<0.000000e+00> : vector<8x128xf32>
    %35 = vector.multi_reduction <add>, %34, %cst_13 [0] : vector<2x8x128xf32> to vector<8x128xf32>
    %36 = arith.addf %33, %35 : vector<8x128xf32>
    %c0_14 = arith.constant 0 : index
    %c0_15 = arith.constant 0 : index
    %c0_16 = arith.constant 0 : index
    %37 = vector.load %arg6[%c0_14, %c0_15, %c0_16] : memref<1x8x128xf32, #tpu.memory_space<vmem>>, vector<1x8x128xf32>
    %38 = vector.shape_cast %37 : vector<1x8x128xf32> to vector<8x128xf32>
    %39 = vector.shape_cast %36 : vector<8x128xf32> to vector<1x8x128xf32>
    tpu.vector_store %arg6[%c0_14, %c0_15, %c0_16], %39 {strides = array<i32>} : memref<1x8x128xf32, #tpu.memory_space<vmem>>, vector<1x8x128xf32>,
    return
  }
  func.func @transform_0(%arg0: i32, %arg1: i32) -> (i32, i32) {
    %c1_i32 = arith.constant 1 : i32
    %0 = arith.muli %arg0, %c1_i32 : i32
    %1 = arith.addi %0, %arg1 : i32
    %c0_i32 = arith.constant 0 : i32
    %2 = arith.minsi %1, %c0_i32 : i32
    %c0_i32_0 = arith.constant 0 : i32
    %c0_i32_1 = arith.constant 0 : i32
    return %2, %c0_i32_0 : i32, i32
  }
  func.func @transform_1(%arg0: i32, %arg1: i32) -> (i32, i32) {
    %c1_i32 = arith.constant 1 : i32
    %0 = arith.muli %arg0, %c1_i32 : i32
    %1 = arith.addi %0, %arg1 : i32
    %c0_i32 = arith.constant 0 : i32
    %2 = arith.minsi %1, %c0_i32 : i32
    %c0_i32_0 = arith.constant 0 : i32
    %c0_i32_1 = arith.constant 0 : i32
    return %2, %c0_i32_0 : i32, i32
  }
  func.func @transform_2(%arg0: i32, %arg1: i32) -> (i32, i32) {
    %c1_i32 = arith.constant 1 : i32
    %0 = arith.muli %arg0, %c1_i32 : i32
    %1 = arith.addi %0, %arg1 : i32
    %c0_i32 = arith.constant 0 : i32
    %2 = arith.minsi %1, %c0_i32 : i32
    %c0_i32_0 = arith.constant 0 : i32
    %c0_i32_1 = arith.constant 0 : i32
    return %2, %c0_i32_0 : i32, i32
  }
  func.func @transform_3(%arg0: i32, %arg1: i32) -> (i32, i32) {
    %c1_i32 = arith.constant 1 : i32
    %0 = arith.muli %arg0, %c1_i32 : i32
    %1 = arith.addi %0, %arg1 : i32
    %c0_i32 = arith.constant 0 : i32
    %2 = arith.minsi %1, %c0_i32 : i32
    %c0_i32_0 = arith.constant 0 : i32
    %c0_i32_1 = arith.constant 0 : i32
    return %2, %c0_i32_0 : i32, i32
  }
  func.func @transform_4(%arg0: i32, %arg1: i32) -> (i32, i32, i32) {
    %c0_i32 = arith.constant 0 : i32
    %c0_i32_0 = arith.constant 0 : i32
    %c0_i32_1 = arith.constant 0 : i32
    return %arg0, %c0_i32, %c0_i32_0 : i32, i32, i32
  }
}

</mosaic_0001>

<llo_original>
// kernel: kl_criterion.1
$region0: #{kl_criterion.1}
  #allocation0 [shape = 'u32[]', space=smem, size = 0x4, offset = 0x4, fixed_abs, tag = 'smem constant byte address 0x4 - core index']
  #allocation1 [shape = 'u32[144,128]{1,0:T(1,128)}', space=vmem, size = 0x12000, scoped, tag = 'internal scratch']
  %s0 = inlined_call_operand.vmem [shape: f32[4,128], index: 0, kind: input, shape index: {}]
  %s1 = inlined_call_operand.vmem [shape: f32[4,128], index: 1, kind: input, shape index: {}]
  %s2 = inlined_call_operand.vmem [shape: f32[4,128], index: 2, kind: input, shape index: {}]
  %s3 = inlined_call_operand.vmem [shape: f32[4,128], index: 3, kind: input, shape index: {}]
  %s4 = inlined_call_operand.vmem [shape: f32[2,8,128], index: 4, kind: output, shape index: {}]
  %s5 = sld [smem:[#allocation0]]
  $region53: #{kl_criterion.1} parent=0
    _
  %s7 = ssub.s32 1, %s5
  %s8 = scalar_select 0, %s7, %s5
  loop: start=0, step=1, limit=4
  $region2: #{kl_criterion.1} parent=0 // loop_pre_header
    _
  $region3: #{kl_criterion.1} parent=0 // loop_header
    %s10 = sphi 0, %s14
    %p11 = scmp.ge.s32.totalorder %s10, 4
    %s17 = sphi 0, %s29
    %s18 = sphi 0, %s25
    %s19 = sphi 0, %s17
    %s20 = sphi 0, %s18
    %s21 = sphi 0, %s19
    %s22 = sphi 0, %s20
    %s38 = sphi 0, %s40
    %s41 = sphi 0, %s38
    %s42 = sphi 0, %s41
    %s58 = sphi 0, %s42
    %s70 = sphi 0, %s72
    %s73 = sphi 0, %s70
    %s74 = sphi 0, %s73
    %s90 = sphi 0, %s74
    %s102 = sphi 0, %s104
    %s105 = sphi 0, %s102
    %s106 = sphi 0, %s105
    %s122 = sphi 0, %s106
    %s134 = sphi 0, %s136
    %s137 = sphi 0, %s134
    %s138 = sphi 0, %s137
    %s154 = sphi 0, %s138
    %s160 = sphi 0, %s162
    %s163 = sphi 0, %s160
    %s164 = sphi 0, %s163
    %s180 = sphi 0, %s164
  $region4: #{kl_criterion.1} parent=0 // loop_header_branch
    %13 = sbr.rel (%p11) target = $region8
  $region5: #{kl_criterion.1} parent=0 // loop_body
    %s15 = ssub.s32 %s10, 1
    %s16 = ssub.s32 %s10, 2
    %s23 = sadd.s32 1, %s18
    %p24 = scmp.ge.s32.totalorder %s23, 1
    %s25 = scalar_select %p24, 0, %s23
    %s26 = sadd.s32 1, %s17
    %s27 = scalar_select %p24, %s26, %s17
    %p28 = scmp.ge.s32.totalorder %s27, 2
    %s29 = scalar_select %p28, 0, %s27
    %s30 = sadd.s32 %s17, %s18
    %p31 = scmp.lt.s32.totalorder %s30, 0
    %s32 = scalar_select %p31, %s30, 0
    %s33 = sadd.s32 %s29, %s25
    %p34 = scmp.lt.s32.totalorder %s33, 0
    %s35 = scalar_select %p34, %s33, 0
    %s36 = ssub.s32 %s32, %s35
    %p37 = scmp.eq.s32.totalorder %s36, 0
    %s39 = sadd.s32 %s38, 1
    %s40 = scalar_select %p37, %s38, %s39
    %p43 = pneg %p37
    %p44 = scmp.eq.s32.totalorder %s10, 1
    %p45 = por %p43, %p44
    %p46 = scmp.ne.s32.totalorder %s38, %s41
    %p47 = scmp.eq.s32.totalorder %s10, 0
    %p48 = por %p46, %p47
    %p49 = scmp.ne.s32.totalorder %s38, %s41
    %p50 = scmp.eq.s32.totalorder %s15, 1
    %p51 = por %p49, %p50
    %p52 = scmp.ne.s32.totalorder %s41, %s42
    %p53 = scmp.eq.s32.totalorder %s15, 0
    %p54 = por %p52, %p53
    %p55 = scmp.ne.s32.totalorder %s41, %s42
    %p56 = scmp.eq.s32.totalorder %s16, 1
    %p57 = por %p55, %p56
    %p59 = scmp.ne.s32.totalorder %s42, %s58
    %p60 = scmp.eq.s32.totalorder %s16, 0
    %p61 = por %p59, %p60
    %s62 = sadd.s32 %s17, %s18
    %p63 = scmp.lt.s32.totalorder %s62, 0
    %s64 = scalar_select %p63, %s62, 0
    %s65 = sadd.s32 %s29, %s25
    %p66 = scmp.lt.s32.totalorder %s65, 0
    %s67 = scalar_select %p66, %s65, 0
    %s68 = ssub.s32 %s64, %s67
    %p69 = scmp.eq.s32.totalorder %s68, 0
    %s71 = sadd.s32 %s70, 1
    %s72 = scalar_select %p69, %s70, %s71
    %p75 = pneg %p69
    %p76 = scmp.eq.s32.totalorder %s10, 1
    %p77 = por %p75, %p76
    %p78 = scmp.ne.s32.totalorder %s70, %s73
    %p79 = scmp.eq.s32.totalorder %s10, 0
    %p80 = por %p78, %p79
    %p81 = scmp.ne.s32.totalorder %s70, %s73
    %p82 = scmp.eq.s32.totalorder %s15, 1
    %p83 = por %p81, %p82
    %p84 = scmp.ne.s32.totalorder %s73, %s74
    %p85 = scmp.eq.s32.totalorder %s15, 0
    %p86 = por %p84, %p85
    %p87 = scmp.ne.s32.totalorder %s73, %s74
    %p88 = scmp.eq.s32.totalorder %s16, 1
    %p89 = por %p87, %p88
    %p91 = scmp.ne.s32.totalorder %s74, %s90
    %p92 = scmp.eq.s32.totalorder %s16, 0
    %p93 = por %p91, %p92
    %s94 = sadd.s32 %s17, %s18
    %p95 = scmp.lt.s32.totalorder %s94, 0
    %s96 = scalar_select %p95, %s94, 0
    %s97 = sadd.s32 %s29, %s25
    %p98 = scmp.lt.s32.totalorder %s97, 0
    %s99 = scalar_select %p98, %s97, 0
    %s100 = ssub.s32 %s96, %s99
    %p101 = scmp.eq.s32.totalorder %s100, 0
    %s103 = sadd.s32 %s102, 1
    %s104 = scalar_select %p101, %s102, %s103
    %p107 = pneg %p101
    %p108 = scmp.eq.s32.totalorder %s10, 1
    %p109 = por %p107, %p108
    %p110 = scmp.ne.s32.totalorder %s102, %s105
    %p111 = scmp.eq.s32.totalorder %s10, 0
    %p112 = por %p110, %p111
    %p113 = scmp.ne.s32.totalorder %s102, %s105
    %p114 = scmp.eq.s32.totalorder %s15, 1
    %p115 = por %p113, %p114
    %p116 = scmp.ne.s32.totalorder %s105, %s106
    %p117 = scmp.eq.s32.totalorder %s15, 0
    %p118 = por %p116, %p117
    %p119 = scmp.ne.s32.totalorder %s105, %s106
    %p120 = scmp.eq.s32.totalorder %s16, 1
    %p121 = por %p119, %p120
    %p123 = scmp.ne.s32.totalorder %s106, %s122
    %p124 = scmp.eq.s32.totalorder %s16, 0
    %p125 = por %p123, %p124
    %s126 = sadd.s32 %s17, %s18
    %p127 = scmp.lt.s32.totalorder %s126, 0
    %s128 = scalar_select %p127, %s126, 0
    %s129 = sadd.s32 %s29, %s25
    %p130 = scmp.lt.s32.totalorder %s129, 0
    %s131 = scalar_select %p130, %s129, 0
    %s132 = ssub.s32 %s128, %s131
    %p133 = scmp.eq.s32.totalorder %s132, 0
    %s135 = sadd.s32 %s134, 1
    %s136 = scalar_select %p133, %s134, %s135
    %p139 = pneg %p133
    %p140 = scmp.eq.s32.totalorder %s10, 1
    %p141 = por %p139, %p140
    %p142 = scmp.ne.s32.totalorder %s134, %s137
    %p143 = scmp.eq.s32.totalorder %s10, 0
    %p144 = por %p142, %p143
    %p145 = scmp.ne.s32.totalorder %s134, %s137
    %p146 = scmp.eq.s32.totalorder %s15, 1
    %p147 = por %p145, %p146
    %p148 = scmp.ne.s32.totalorder %s137, %s138
    %p149 = scmp.eq.s32.totalorder %s15, 0
    %p150 = por %p148, %p149
    %p151 = scmp.ne.s32.totalorder %s137, %s138
    %p152 = scmp.eq.s32.totalorder %s16, 1
    %p153 = por %p151, %p152
    %p155 = scmp.ne.s32.totalorder %s138, %s154
    %p156 = scmp.eq.s32.totalorder %s16, 0
    %p157 = por %p155, %p156
    %s158 = ssub.s32 %s17, %s29
    %p159 = scmp.eq.s32.totalorder %s158, 0
    %s161 = sadd.s32 %s160, 1
    %s162 = scalar_select %p159, %s160, %s161
    %p165 = pneg %p159
    %p166 = scmp.eq.s32.totalorder %s10, 1
    %p167 = por %p165, %p166
    %p168 = scmp.ne.s32.totalorder %s160, %s163
    %p169 = scmp.eq.s32.totalorder %s10, 0
    %p170 = por %p168, %p169
    %p171 = scmp.ne.s32.totalorder %s160, %s163
    %p172 = scmp.eq.s32.totalorder %s15, 1
    %p173 = por %p171, %p172
    %p174 = scmp.ne.s32.totalorder %s163, %s164
    %p175 = scmp.eq.s32.totalorder %s15, 0
    %p176 = por %p174, %p175
    %p177 = scmp.ne.s32.totalorder %s163, %s164
    %p178 = scmp.eq.s32.totalorder %s16, 1
    %p179 = por %p177, %p178
    %p181 = scmp.ne.s32.totalorder %s164, %s180
    %p182 = scmp.eq.s32.totalorder %s16, 0
    %p183 = por %p181, %p182
    %p184 = scmp.le.s32.totalorder 1, %s10
    %p185 = scmp.lt.s32.totalorder %s10, 3
    %p186 = pnand %p184, %p185
    %p187 = pneg %p186
    // Predicated region
    $region9: #{kl_criterion.1} parent=5 // pred_check
      _
    $region10: #{kl_criterion.1} parent=5 // pred_check_branch
      %189 = sbr.rel (%p186) target = $region12
    $region11: #{kl_criterion.1} parent=5 // pred_region
      %s190 = ssub.s32 %s10, 1
    $region12: #{kl_criterion.1} parent=5 // pred_fallthru
      _
    %p191 = scmp.lt.s32.totalorder %s10, 2
    // Predicated region
    $region13: #{kl_criterion.1} parent=5 // pred_check
      %p192 = pneg %p191
    $region14: #{kl_criterion.1} parent=5 // pred_check_branch
      %194 = sbr.rel (%p192) target = $region16
    $region15: #{kl_criterion.1} parent=5 // pred_region
      // Predicated region
      $region17: #{kl_criterion.1} parent=15 // pred_check
        %p195 = pneg %p48
      $region18: #{kl_criterion.1} parent=15 // pred_check_branch
        %197 = sbr.rel (%p195) target = $region20
      $region19: #{kl_criterion.1} parent=15 // pred_region
        %s198 = sadd.s32 %s17, %s18
        %p199 = scmp.lt.s32.totalorder %s198, 0
        %s200 = scalar_select %p199, %s198, 0
        %s201 = smul.u32 4, %s200
        %s202 = ssub.s32 1, %s201
        %s203 = smul.u32 64, %s202
        %p204 = scmp.lt.s32.totalorder %s201, 0
        %s205 = scalar_select %p204, %s201, 0
        %s206 = smul.addr %s205, 4
        %s207 = scalar_lea.vmem %s0, %s206
        %s208 = sadd.s32 %s17, %s18
        %p209 = scmp.lt.s32.totalorder %s208, 0
        %s210 = scalar_select %p209, %s208, 0
        %s211 = smul.u32 4, %s210
        %s212 = ssub.s32 1, %s211
        %s213 = smul.u32 64, %s212
      $region20: #{kl_criterion.1} parent=15 // pred_fallthru
        _
      // Predicated region
      $region21: #{kl_criterion.1} parent=15 // pred_check
        %p214 = pneg %p80
      $region22: #{kl_criterion.1} parent=15 // pred_check_branch
        %216 = sbr.rel (%p214) target = $region24
      $region23: #{kl_criterion.1} parent=15 // pred_region
        %s217 = sadd.s32 %s17, %s18
        %p218 = scmp.lt.s32.totalorder %s217, 0
        %s219 = scalar_select %p218, %s217, 0
        %s220 = smul.u32 4, %s219
        %s221 = ssub.s32 1, %s220
        %s222 = smul.u32 64, %s221
        %p223 = scmp.lt.s32.totalorder %s220, 0
        %s224 = scalar_select %p223, %s220, 0
        %s225 = smul.addr %s224, 4
        %s226 = scalar_lea.vmem %s1, %s225
        %s227 = sadd.s32 %s17, %s18
        %p228 = scmp.lt.s32.totalorder %s227, 0
        %s229 = scalar_select %p228, %s227, 0
        %s230 = smul.u32 4, %s229
        %s231 = ssub.s32 1, %s230
        %s232 = smul.u32 64, %s231
      $region24: #{kl_criterion.1} parent=15 // pred_fallthru
        _
      // Predicated region
      $region25: #{kl_criterion.1} parent=15 // pred_check
        %p233 = pneg %p112
      $region26: #{kl_criterion.1} parent=15 // pred_check_branch
        %235 = sbr.rel (%p233) target = $region28
      $region27: #{kl_criterion.1} parent=15 // pred_region
        %s236 = sadd.s32 %s17, %s18
        %p237 = scmp.lt.s32.totalorder %s236, 0
        %s238 = scalar_select %p237, %s236, 0
        %s239 = smul.u32 4, %s238
        %s240 = ssub.s32 1, %s239
        %s241 = smul.u32 64, %s240
        %p242 = scmp.lt.s32.totalorder %s239, 0
        %s243 = scalar_select %p242, %s239, 0
        %s244 = smul.addr %s243, 4
        %s245 = scalar_lea.vmem %s2, %s244
        %s246 = sadd.s32 %s17, %s18
        %p247 = scmp.lt.s32.totalorder %s246, 0
        %s248 = scalar_select %p247, %s246, 0
        %s249 = smul.u32 4, %s248
        %s250 = ssub.s32 1, %s249
        %s251 = smul.u32 64, %s250
      $region28: #{kl_criterion.1} parent=15 // pred_fallthru
        _
      // Predicated region
      $region29: #{kl_criterion.1} parent=15 // pred_check
        %p252 = pneg %p144
      $region30: #{kl_criterion.1} parent=15 // pred_check_branch
        %254 = sbr.rel (%p252) target = $region32
      $region31: #{kl_criterion.1} parent=15 // pred_region
        %s255 = sadd.s32 %s17, %s18
        %p256 = scmp.lt.s32.totalorder %s255, 0
        %s257 = scalar_select %p256, %s255, 0
        %s258 = smul.u32 4, %s257
        %s259 = ssub.s32 1, %s258
        %s260 = smul.u32 64, %s259
        %p261 = scmp.lt.s32.totalorder %s258, 0
        %s262 = scalar_select %p261, %s258, 0
        %s263 = smul.addr %s262, 4
        %s264 = scalar_lea.vmem %s3, %s263
        %s265 = sadd.s32 %s17, %s18
        %p266 = scmp.lt.s32.totalorder %s265, 0
        %s267 = scalar_select %p266, %s265, 0
        %s268 = smul.u32 4, %s267
        %s269 = ssub.s32 1, %s268
        %s270 = smul.u32 64, %s269
      $region32: #{kl_criterion.1} parent=15 // pred_fallthru
        _
    $region16: #{kl_criterion.1} parent=5 // pred_fallthru
      _
    %p271 = scmp.le.s32.totalorder 1, %s10
    %p272 = scmp.lt.s32.totalorder %s10, 3
    %p273 = pnand %p271, %p272
    %p274 = pneg %p273
    // Predicated region
    $region33: #{kl_criterion.1} parent=5 // pred_check
      _
    $region34: #{kl_criterion.1} parent=5 // pred_check_branch
      %276 = sbr.rel (%p273) target = $region36
    $region35: #{kl_criterion.1} parent=5 // pred_region
      %s277 = ssub.s32 %s10, 1
      %s278 = sadd.s32 %s19, %s20
      %p279 = scmp.lt.s32.totalorder %s278, 0
      %s280 = scalar_select %p279, %s278, 0
      %s281 = smul.u32 4, %s280
      %s282 = ssub.s32 1, %s281
      %s283 = smul.u32 64, %s282
      %p284 = scmp.lt.s32.totalorder %s281, 0
      %s285 = scalar_select %p284, %s281, 0
      %s286 = smul.addr %s285, 4
      %s287 = scalar_lea.vmem %s0, %s286
      %p288 = pneg %p54
      %p289 = pneg %p51
      %s290 = sadd.s32 %s19, %s20
      %p291 = scmp.lt.s32.totalorder %s290, 0
      %s292 = scalar_select %p291, %s290, 0
      %s293 = smul.u32 4, %s292
      %s294 = ssub.s32 1, %s293
      %s295 = smul.u32 64, %s294
      %p296 = scmp.lt.s32.totalorder %s293, 0
      %s297 = scalar_select %p296, %s293, 0
      %s298 = smul.addr %s297, 4
      %s299 = scalar_lea.vmem %s1, %s298
      %p300 = pneg %p86
      %p301 = pneg %p83
      %s302 = sadd.s32 %s19, %s20
      %p303 = scmp.lt.s32.totalorder %s302, 0
      %s304 = scalar_select %p303, %s302, 0
      %s305 = smul.u32 4, %s304
      %s306 = ssub.s32 1, %s305
      %s307 = smul.u32 64, %s306
      %p308 = scmp.lt.s32.totalorder %s305, 0
      %s309 = scalar_select %p308, %s305, 0
      %s310 = smul.addr %s309, 4
      %s311 = scalar_lea.vmem %s2, %s310
      %p312 = pneg %p118
      %p313 = pneg %p115
      %s314 = sadd.s32 %s19, %s20
      %p315 = scmp.lt.s32.totalorder %s314, 0
      %s316 = scalar_select %p315, %s314, 0
      %s317 = smul.u32 4, %s316
      %s318 = ssub.s32 1, %s317
      %s319 = smul.u32 64, %s318
      %p320 = scmp.lt.s32.totalorder %s317, 0
      %s321 = scalar_select %p320, %s317, 0
      %s322 = smul.addr %s321, 4
      %s323 = scalar_lea.vmem %s3, %s322
      %p324 = pneg %p150
      %p325 = pneg %p147
      %p326 = pneg %p176
      %p327 = pneg %p173
      %p328 = scmp.lt.s32.totalorder %s19, 1
      %s329 = scalar_select %p328, %s19, 1
      %s330 = smul.addr %s329, 8
      %s331 = scalar_lea.vmem %s4, %s330
      %s332 = sadd.s32 %s19, %s20
      %p333 = scmp.lt.s32.totalorder %s332, 0
      %s334 = scalar_select %p333, %s332, 0
      %s335 = smul.u32 4, %s334
      %s336 = ssub.s32 1, %s335
      %s337 = smul.u32 64, %s336
      %p338 = scmp.lt.s32.totalorder %s335, 0
      %s339 = scalar_select %p338, %s335, 0
      %s340 = smul.addr %s339, 4
      %s341 = scalar_lea.vmem %s0, %s340
      %s342 = sadd.s32 %s19, %s20
      %p343 = scmp.lt.s32.totalorder %s342, 0
      %s344 = scalar_select %p343, %s342, 0
      %s345 = smul.u32 4, %s344
      %s346 = ssub.s32 1, %s345
      %s347 = smul.u32 64, %s346
      %s348 = sadd.s32 %s19, %s20
      %p349 = scmp.lt.s32.totalorder %s348, 0
      %s350 = scalar_select %p349, %s348, 0
      %s351 = smul.u32 4, %s350
      %s352 = ssub.s32 1, %s351
      %s353 = smul.u32 64, %s352
      %p354 = scmp.lt.s32.totalorder %s351, 0
      %s355 = scalar_select %p354, %s351, 0
      %s356 = smul.addr %s355, 4
      %s357 = scalar_lea.vmem %s1, %s356
      %s358 = sadd.s32 %s19, %s20
      %p359 = scmp.lt.s32.totalorder %s358, 0
      %s360 = scalar_select %p359, %s358, 0
      %s361 = smul.u32 4, %s360
      %s362 = ssub.s32 1, %s361
      %s363 = smul.u32 64, %s362
      %s364 = sadd.s32 %s19, %s20
      %p365 = scmp.lt.s32.totalorder %s364, 0
      %s366 = scalar_select %p365, %s364, 0
      %s367 = smul.u32 4, %s366
      %s368 = ssub.s32 1, %s367
      %s369 = smul.u32 64, %s368
      %p370 = scmp.lt.s32.totalorder %s367, 0
      %s371 = scalar_select %p370, %s367, 0
      %s372 = smul.addr %s371, 4
      %s373 = scalar_lea.vmem %s2, %s372
      %s374 = sadd.s32 %s19, %s20
      %p375 = scmp.lt.s32.totalorder %s374, 0
      %s376 = scalar_select %p375, %s374, 0
      %s377 = smul.u32 4, %s376
      %s378 = ssub.s32 1, %s377
      %s379 = smul.u32 64, %s378
      %s380 = sadd.s32 %s19, %s20
      %p381 = scmp.lt.s32.totalorder %s380, 0
      %s382 = scalar_select %p381, %s380, 0
      %s383 = smul.u32 4, %s382
      %s384 = ssub.s32 1, %s383
      %s385 = smul.u32 64, %s384
      %p386 = scmp.lt.s32.totalorder %s383, 0
      %s387 = scalar_select %p386, %s383, 0
      %s388 = smul.addr %s387, 4
      %s389 = scalar_lea.vmem %s3, %s388
      %s390 = sadd.s32 %s19, %s20
      %p391 = scmp.lt.s32.totalorder %s390, 0
      %s392 = scalar_select %p391, %s390, 0
      %s393 = smul.u32 4, %s392
      %s394 = ssub.s32 1, %s393
      %s395 = smul.u32 64, %s394
      %p396 = scmp.lt.s32.totalorder %s19, 1
      %s397 = scalar_select %p396, %s19, 1
      %s398 = smul.addr %s397, 8
      %s399 = scalar_lea.vmem %s4, %s398
      %p400 = scmp.eq.s32.totalorder %s20, 0
      // Predicated region
      $region37: #{kl_criterion.1} parent=35 // pred_check
        %p401 = pneg %p400
      $region38: #{kl_criterion.1} parent=35 // pred_check_branch
        %403 = sbr.rel (%p401) target = $region40
      $region39: #{kl_criterion.1} parent=35 // pred_region
        %404 = vst [vmem:[%s399] sm:$0xff] 0.0
      $region40: #{kl_criterion.1} parent=35 // pred_fallthru
        _
      %v405 = vld [vmem:[%s341] sm:$0xff]
      %v406 = vld [vmem:[%s341 + $0x8] sm:$0xff]
      %v407 = vld [vmem:[%s357] sm:$0xff]
      %v408 = vld [vmem:[%s357 + $0x8] sm:$0xff]
      %v409 = vld [vmem:[%s373] sm:$0xff]
      %v410 = vld [vmem:[%s373 + $0x8] sm:$0xff]
      %v411 = vld [vmem:[%s389] sm:$0xff]
      %v412 = vld [vmem:[%s389 + $0x8] sm:$0xff]
      %v413 = vsub.f32 %v405, %v409
      %v414 = vsub.f32 %v406, %v410
      %v415 = vsub.f32 %v411, %v407
      %v416 = vsub.f32 %v412, %v408
      %v417 = vsub.f32 %v407, %v411
      %v418 = vsub.f32 %v408, %v412
      %v419 = vmul.f32 %v417, 1.442695
      %v420 = vpow.pop %v419
      %v421 = vmul.f32 %v418, 1.442695
      %v422 = vpow.pop %v421
      %v423 = vadd.f32 %v415, %v420
      %v424 = vadd.f32 %v416, %v422
      %v425 = vmul.f32 %v413, %v413
      %v426 = vmul.f32 %v414, %v414
      %v427 = vsub.f32 0.0, %v411
      %v428 = vsub.f32 0.0, %v412
      %v429 = vmul.f32 %v427, 1.442695
      %v430 = vpow.pop %v429
      %v431 = vmul.f32 %v428, 1.442695
      %v432 = vpow.pop %v431
      %v433 = vmul.f32 %v425, %v430
      %v434 = vmul.f32 %v426, %v432
      %v435 = vadd.f32 %v423, %v433
      %v436 = vadd.f32 %v424, %v434
      %v437 = vsub.f32 %v435, 1.0
      %v438 = vsub.f32 %v436, 1.0
      %s439 = sadd.s32 %s19, %s20
      %s440 = smul.u32 %s439, 16
      %v441 = vlaneseq
      %v442 = vshrl.u32 %v441, 7
      %v443 = vadd.s32 %v442, 8
      %v444 = vstv %s440
      %v445 = vadd.s32 %v444, %v442
      %v446 = vadd.s32 %v444, %v443
      %vm447 = vcmp.lt.s32.totalorder %v445, 4
      %vm448 = vcmp.lt.s32.totalorder %v446, 4
      %v449 = vsel %vm447, 1, 0
      %v450 = vsel %vm448, 1, 0
      %vm451 = vcmp.eq.s32.totalorder %v449, 1
      %vm452 = vcmp.eq.s32.totalorder %v450, 1
      %v453 = vsel %vm451, %v437, 0.0
      %v454 = vsel %vm452, %v438, 0.0
      %v455 = vld [vmem:[%s399] sm:$0xff]
      %v456 = vadd.f32 %v453, %v454
      %v457 = vadd.f32 %v455, %v456
      %458 = vst [vmem:[%s399] sm:$0xff] %v457
      %p459 = scmp.lt.s32.totalorder %s19, 1
      %s460 = scalar_select %p459, %s19, 1
      %s461 = smul.addr %s460, 8
      %s462 = scalar_lea.vmem %s4, %s461
      // Predicated region
      $region41: #{kl_criterion.1} parent=35 // pred_check
        %p463 = pneg %p173
      $region42: #{kl_criterion.1} parent=35 // pred_check_branch
        %465 = sbr.rel (%p463) target = $region44
      $region43: #{kl_criterion.1} parent=35 // pred_region
        _
      $region44: #{kl_criterion.1} parent=35 // pred_fallthru
        _
    $region36: #{kl_criterion.1} parent=5 // pred_fallthru
      _
    %p466 = scmp.le.s32.totalorder 2, %s10
    // Predicated region
    $region45: #{kl_criterion.1} parent=5 // pred_check
      %p467 = pneg %p466
    $region46: #{kl_criterion.1} parent=5 // pred_check_branch
      %469 = sbr.rel (%p467) target = $region48
    $region47: #{kl_criterion.1} parent=5 // pred_region
      %s470 = ssub.s32 %s10, 2
      // Predicated region
      $region49: #{kl_criterion.1} parent=47 // pred_check
        %p471 = pneg %p179
      $region50: #{kl_criterion.1} parent=47 // pred_check_branch
        %473 = sbr.rel (%p471) target = $region52
      $region51: #{kl_criterion.1} parent=47 // pred_region
        %p474 = scmp.lt.s32.totalorder %s21, 1
        %s475 = scalar_select %p474, %s21, 1
        %s476 = smul.addr %s475, 8
        %s477 = scalar_lea.vmem %s4, %s476
      $region52: #{kl_criterion.1} parent=47 // pred_fallthru
        _
    $region48: #{kl_criterion.1} parent=5 // pred_fallthru
      _
  $region6: #{kl_criterion.1} parent=0 // loop_footer
    %s14 = sadd.s32 1, %s10
  $region7: #{kl_criterion.1} parent=0 // loop_footer_branch
    %9 = sbr.rel target = $region3
  $region8: #{kl_criterion.1} parent=0 // loop_exit
    _

</llo_original>
